<compile_context>
chip_gen: v7x
topology: tpu7x:2x2x1
jax: 0.10.0
libtpu: 0.0.40
codegen_flags: <defaults>
</compile_context>

<pallas_src>
import functools

import jax
import jax.numpy as jnp
from jax.experimental import pallas as pl
from jax.experimental.pallas import tpu as pltpu

_EPS = 1e-30                      # guards rsqrt(0) for silent noise; no-op for real audio


def _round_up(x: int, m: int) -> int:
    return ((x + m - 1) // m) * m


def _vmem_capacity_bytes() -> int:
    """Physical VMEM per TensorCore (v5e/v6e: 128 MiB, v7x: 64 MiB)."""
    try:
        return int(pltpu.get_tpu_info().vmem_capacity_bytes)
    except Exception:
        return 64 * 1024 * 1024          # conservative fallback = v7x per-TC size


# ======================================================================================
# Fast path: clip + noise window resident in VMEM, single pass (3*C*T bytes HBM traffic).
# The noise-window slice is one manual DMA whose start offset is read from the
# scalar-prefetched SMEM ref, so unaligned random starts are fused with no extra copy.
# ======================================================================================
def _fused_kernel(start_ref, wav_ref, noise_hbm_ref, out_ref, noise_vmem, sem, *,
                  snr_factor):
    t = out_ref.shape[-1]
    cp = pltpu.make_async_copy(
        noise_hbm_ref.at[:, pl.ds(start_ref[0], t)], noise_vmem, sem)
    cp.start()

    # Overlap the waveform-energy reduction with the noise-window DMA.
    wav = wav_ref[...].astype(jnp.float32)
    e_sig = jnp.sum(wav * wav, axis=-1, keepdims=True)

    cp.wait()
    nz = noise_vmem[...].astype(jnp.float32)
    e_noise = jnp.maximum(jnp.sum(nz * nz, axis=-1, keepdims=True), _EPS)

    # scale = sqrt(E_sig / E_noise) * 10**(-snr_db/20)   (snr_factor precomputed on host)
    scale = jnp.sqrt(e_sig) * jax.lax.rsqrt(e_noise) * snr_factor
    out_ref[...] = (wav + scale * nz).astype(out_ref.dtype)


def _fused_call(wavform, noise, start_arr, snr_factor, vmem_limit):
    num_ch, num_samples = wavform.shape
    return pl.pallas_call(
        functools.partial(_fused_kernel, snr_factor=snr_factor),
        out_shape=jax.ShapeDtypeStruct((num_ch, num_samples), wavform.dtype),
        grid_spec=pltpu.PrefetchScalarGridSpec(
            num_scalar_prefetch=1,
            grid=(1,),
            in_specs=[
                pl.BlockSpec((num_ch, num_samples), lambda i, st: (0, 0)),  # waveform
                pl.BlockSpec(memory_space=pl.ANY),                          # noise (HBM)
            ],
            out_specs=pl.BlockSpec((num_ch, num_samples), lambda i, st: (0, 0)),
            scratch_shapes=[pltpu.VMEM((num_ch, num_samples), noise.dtype),
                            pltpu.SemaphoreType.DMA(())],
        ),
        compiler_params=pltpu.CompilerParams(
            dimension_semantics=("arbitrary",),
            vmem_limit_bytes=vmem_limit),
        # TODO(synk): expose input_output_aliases={1: 0} as an opt-in for callers that can
        # donate `wavform` (halves peak HBM footprint; does not change bandwidth).
    )(start_arr, wavform, noise)


# ======================================================================================
# Streaming path (clips too long for VMEM): 2 HBM-streaming passes over 128-multiple
# time tiles, noise offset fused as a scalar-prefetched block offset.
# ======================================================================================
def _energy_scale_kernel(nblk_ref, wav_ref, noise_ref, scale_ref,
                         e_sig_ref, e_noise_ref, *,
                         snr_factor, total_t, time_tile, needs_mask):
    """Pass 1: accumulate per-channel energies over time tiles; emit scale (C, 1)."""
    del nblk_ref                              # consumed by the index_maps only
    j = pl.program_id(0)
    last = pl.num_programs(0) - 1

    @pl.when(j == 0)
    def _init():
        e_sig_ref[...] = jnp.zeros_like(e_sig_ref)
        e_noise_ref[...] = jnp.zeros_like(e_noise_ref)

    wav = wav_ref[...].astype(jnp.float32)
    nz = noise_ref[...].astype(jnp.float32)

    def _accumulate(w, n):
        e_sig_ref[...] += jnp.sum(w * w, axis=-1, keepdims=True)
        e_noise_ref[...] += jnp.sum(n * n, axis=-1, keepdims=True)

    if needs_mask:  # static: only emitted when T is not a multiple of the tile
        # Ragged-tail mask is gated to the LAST tile only; steady-state tiles pay no
        # iota/select work (perf-review item).  Mask ordering matters: padded garbage
        # must be zeroed before squaring.
        @pl.when(j != last)
        def _steady():
            _accumulate(wav, nz)

        @pl.when(j == last)
        def _tail():
            lane = jax.lax.broadcasted_iota(jnp.int32, wav.shape, 1)
            valid = (j * time_tile + lane) < total_t
            _accumulate(jnp.where(valid, wav, 0.0), jnp.where(valid, nz, 0.0))
    else:
        _accumulate(wav, nz)

    @pl.when(j == last)
    def _finalize():
        e_s = e_sig_ref[...]
        e_n = jnp.maximum(e_noise_ref[...], _EPS)
        scale_ref[...] = jnp.sqrt(e_s) * jax.lax.rsqrt(e_n) * snr_factor


def _apply_kernel(nblk_ref, scale_ref, wav_ref, noise_ref, out_ref):
    """Pass 2 (fully parallel over time tiles): out = wav + scale * noise."""
    del nblk_ref
    wav = wav_ref[...].astype(jnp.float32)
    nz = noise_ref[...].astype(jnp.float32)
    out_ref[...] = (wav + scale_ref[...] * nz).astype(out_ref.dtype)


def _pick_time_tile(num_channels, num_samples, itemsize, vmem_cap) -> int:
    """Largest 128-multiple time tile keeping 3 double-buffered streams in budget."""
    c_pad = _round_up(max(num_channels, 1), 8)            # sublane padding
    budget = min(24 * 1024 * 1024, int(vmem_cap * 0.375))
    tk = budget // (6 * c_pad * max(itemsize, 4))         # 3 streams x 2 buffers
    tk = max(128, (tk // 128) * 128)
    tk = min(tk, 32 * 1024)                               # plenty to hit the HBM roofline
    return min(tk, _round_up(num_samples, 128))


def _stream_vmem_limit(num_ch, tk, itemsize, vmem_cap) -> int:
    """vmem_limit derived from the real tile working set (perf-review item: v7x safety)."""
    c_pad = _round_up(num_ch, 8)
    per_stream = c_pad * tk * max(itemsize, 4)
    need = 8 * per_stream + (4 << 20)                     # buffers + temporaries + slack
    return int(min(max(need, 16 << 20), int(0.9 * vmem_cap)))


def _streaming_call(wavform, noise, start_point, snr_factor, tk, vmem_cap):
    num_ch, num_samples = wavform.shape
    ntiles = pl.cdiv(num_samples, tk)
    vmem_limit = _stream_vmem_limit(num_ch, tk, wavform.dtype.itemsize, vmem_cap)

    if start_point % tk == 0:
        # Fully fused noise-window slice: block offset travels through scalar prefetch.
        noise_arr = noise
        noise_blk0 = start_point // tk
    else:
        # TODO(synk): unaligned random starts on this larger-than-VMEM path still pay one
        # XLA slice copy; fusing them needs a double-buffered manual DMA of
        # noise.at[:, pl.ds(start + j*tk, tk)] in both passes (fast path already fuses it).
        noise_arr = jax.lax.dynamic_slice(noise, (0, start_point),
                                          (num_ch, num_samples))
        noise_blk0 = 0

    nblk = jnp.asarray([noise_blk0], dtype=jnp.int32)     # scalar-prefetch operand

    # ---- Pass 1: per-channel energies -> scale (C, 1) -------------------------------
    scale = pl.pallas_call(
        functools.partial(_energy_scale_kernel,
                          snr_factor=snr_factor,
                          total_t=num_samples,
                          time_tile=tk,
                          needs_mask=(num_samples % tk != 0)),
        out_shape=jax.ShapeDtypeStruct((num_ch, 1), jnp.float32),
        grid_spec=pltpu.PrefetchScalarGridSpec(
            num_scalar_prefetch=1,
            grid=(ntiles,),
            in_specs=[
                pl.BlockSpec((num_ch, tk), lambda j, nb: (0, j)),            # waveform
                pl.BlockSpec((num_ch, tk), lambda j, nb: (0, nb[0] + j)),    # noise (offset)
            ],
            out_specs=pl.BlockSpec((num_ch, 1), lambda j, nb: (0, 0)),       # resident
            scratch_shapes=[pltpu.VMEM((num_ch, 1), jnp.float32),            # e_sig
                            pltpu.VMEM((num_ch, 1), jnp.float32)],           # e_noise
        ),
        compiler_params=pltpu.CompilerParams(
            dimension_semantics=("arbitrary",),          # sequential reduction axis
            vmem_limit_bytes=vmem_limit),
    )(nblk, wavform, noise_arr)

    # ---- Pass 2: elementwise apply, parallel over time tiles -------------------------
    # TODO(synk): on v7x, switch this axis to pltpu.CORE_PARALLEL (gated on chip version)
    # so both TensorCores split the tile range; plain "parallel" is a no-op on 1-TC chips.
    out = pl.pallas_call(
        _apply_kernel,
        out_shape=jax.ShapeDtypeStruct((num_ch, num_samples), wavform.dtype),
        grid_spec=pltpu.PrefetchScalarGridSpec(
            num_scalar_prefetch=1,
            grid=(ntiles,),
            in_specs=[
                pl.BlockSpec((num_ch, 1), lambda j, nb: (0, 0)),             # scale
                pl.BlockSpec((num_ch, tk), lambda j, nb: (0, j)),            # waveform
                pl.BlockSpec((num_ch, tk), lambda j, nb: (0, nb[0] + j)),    # noise (offset)
            ],
            out_specs=pl.BlockSpec((num_ch, tk), lambda j, nb: (0, j)),
        ),
        compiler_params=pltpu.CompilerParams(
            dimension_semantics=("parallel",),
            vmem_limit_bytes=vmem_limit),
    )(nblk, scale, wavform, noise_arr)
    return out


# ======================================================================================
# Public wrapper (mirrors BackgroundNoise.forward; start_point replaces the host-side
# np.random.randint of the PyTorch module, is_random=False -> start_point=0).
# ======================================================================================
def background_noise(wavform: jax.Array,
                     noise: jax.Array,
                     noise_level: float,
                     start_point: int = 0,
                     *,
                     time_tile: int | None = None,
                     use_fast_path: bool | None = None) -> jax.Array:
    num_ch, num_samples = wavform.shape
    noise_ch, noise_samples = noise.shape
    if noise_ch != num_ch:
        raise ValueError("noise and waveform must have the same channel count")
    start_point = int(start_point)
    if start_point < 0 or start_point + num_samples > noise_samples:
        raise ValueError("noise track too short for the requested window")

    snr_factor = float(10.0 ** (-float(noise_level) / 20.0))    # host-side precompute
    vmem_cap = _vmem_capacity_bytes()

    # Generation-aware fast-path threshold: padded f32 working set (wav + out buffers,
    # noise scratch, Mosaic temporaries) must fit comfortably in physical VMEM.
    c_pad = _round_up(num_ch, 8)
    t_pad = _round_up(num_samples, 128)
    resident = c_pad * t_pad * 4
    fast_need = 8 * resident + (2 << 20)
    if use_fast_path is None:
        use_fast_path = fast_need <= int(0.45 * vmem_cap)

    if use_fast_path:
        fast_limit = int(min(0.9 * vmem_cap, max(fast_need + (8 << 20), 16 << 20)))
        start_arr = jnp.asarray([start_point], dtype=jnp.int32)
        try:
            return _fused_call(wavform, noise, start_arr, snr_factor, fast_limit)
        except Exception:
            # TODO(synk): if a toolchain rejects the dynamic minor-dim DMA offset, fall
            # back to the (known-good) streaming two-pass path below.
            pass

    tk = time_tile if time_tile is not None else _pick_time_tile(
        num_ch, num_samples, wavform.dtype.itemsize, vmem_cap)
    if tk % 128 != 0:
        raise ValueError("time_tile must be a multiple of 128")
    return _streaming_call(wavform, noise, start_point, snr_factor, tk, vmem_cap)


def _reference(wavform, noise, noise_level, start_point=0):
    """Pure-JAX reference of torchaudio add_noise for verification."""
    C, T = wavform.shape
    noise_period = jax.lax.dynamic_slice(noise, (0, start_point), (C, T))
    e_sig = jnp.sum(wavform.astype(jnp.float32) ** 2, axis=-1, keepdims=True)
    e_noise = jnp.sum(noise_period.astype(jnp.float32) ** 2, axis=-1, keepdims=True)
    snr_orig = 10.0 * (jnp.log10(e_sig) - jnp.log10(e_noise))
    scale = 10.0 ** ((snr_orig - noise_level) / 20.0)
    return (wavform + scale * noise_period).astype(wavform.dtype)


if __name__ == "__main__":
    key = jax.random.PRNGKey(0)
    k_wav, k_noise, k_wav2 = jax.random.split(key, 3)

    C = 4                    # channels
    NOISE_T = 4096           # background-noise track length
    noise_level = 10.0       # target SNR in dB
    noise = jax.random.normal(k_noise, (C, NOISE_T), dtype=jnp.float32) * 0.5

    T = 2048
    wavform = jax.random.normal(k_wav, (C, T), dtype=jnp.float32)
    T2 = 2000
    wavform2 = jax.random.normal(k_wav2, (C, T2), dtype=jnp.float32)

    def check(out, ref, tag):
        out = jax.block_until_ready(out)
        assert out.shape == ref.shape and out.dtype == ref.dtype, tag
        assert jnp.allclose(out, ref, rtol=1e-4, atol=1e-5), f"mismatch: {tag}"

    # --- Fast path (VMEM-resident single pass): default start and unaligned random start.
    for start in (0, 300):
        out = background_noise(wavform, noise, noise_level, start_point=start)
        check(out, _reference(wavform, noise, noise_level, start), f"fast start={start}")

    # Fast path with a waveform length that is not a multiple of 128.
    out = background_noise(wavform2, noise, noise_level, start_point=123)
    check(out, _reference(wavform2, noise, noise_level, 123), "fast ragged T")

    # --- Streaming path (forced): tile-aligned fused offset, ragged tail, unaligned fallback.
    for start, wf in ((0, wavform), (512, wavform), (0, wavform2), (300, wavform)):
        out = background_noise(wf, noise, noise_level, start_point=start,
                               time_tile=512, use_fast_path=False)
        check(out, _reference(wf, noise, noise_level, start),
              f"stream start={start} T={wf.shape[1]}")

    print("KERNEL_OK")
</pallas_src>

<mosaic_0001>
module attributes {stable_mosaic.version = 11 : i64} {
  func.func @_fused_kernel(%arg0: i32, %arg1: memref<1xi32, #tpu.memory_space<smem>>, %arg2: memref<4x2048xf32, #tpu.memory_space<vmem>>, %arg3: memref<4x4096xf32, #tpu.memory_space<any>>, %arg4: memref<4x2048xf32, #tpu.memory_space<vmem>>, %arg5: memref<4x2048xf32, #tpu.memory_space<vmem>>, %arg6: memref<!tpu.dma_semaphore, #tpu.memory_space<semaphore_mem>>) attributes {dimension_semantics = [#tpu.dimension_semantics<arbitrary>], iteration_bounds = array<i64: 1>, scalar_prefetch = 1 : i64, scratch_operands = 2 : i64, tpu.core_type = #tpu.core_type<tc>, window_params = [{pipeline_mode = #tpu.pipeline_mode<synchronous>, transform_indices = @transform_0, window_bounds = array<i64: 4, 2048>}, {}, {pipeline_mode = #tpu.pipeline_mode<synchronous>, transform_indices = @transform_2, window_bounds = array<i64: 4, 2048>}]} {
    %c0 = arith.constant 0 : index
    %0 = memref.load %arg1[%c0] : memref<1xi32, #tpu.memory_space<smem>>
    %c0_i32 = arith.constant 0 : i32
    %1 = tpu.memref_slice %arg3[%c0_i32, %0] : memref<4x4096xf32, #tpu.memory_space<any>> -> memref<4x2048xf32, #tpu.memory_space<any>>
    tpu.enqueue_dma source(%1 : memref<4x2048xf32, #tpu.memory_space<any>>) target(%arg5 : memref<4x2048xf32, #tpu.memory_space<vmem>>) target_semaphore(%arg6 : memref<!tpu.dma_semaphore, #tpu.memory_space<semaphore_mem>>)
    %c0_0 = arith.constant 0 : index
    %c0_1 = arith.constant 0 : index
    %2 = vector.load %arg2[%c0_0, %c0_1] : memref<4x2048xf32, #tpu.memory_space<vmem>>, vector<4x2048xf32>
    %3 = arith.mulf %2, %2 : vector<4x2048xf32>
    %cst = arith.constant dense<0.000000e+00> : vector<4xf32>
    %4 = vector.multi_reduction <add>, %3, %cst [1] : vector<4x2048xf32> to vector<4xf32>
    %5 = vector.shape_cast %4 : vector<4xf32> to vector<4x1xf32>
    %c0_i32_2 = arith.constant 0 : i32
    %6 = tpu.memref_slice %arg3[%c0_i32_2, %0] : memref<4x4096xf32, #tpu.memory_space<any>> -> memref<4x2048xf32, #tpu.memory_space<any>>
    tpu.wait_dma2 semaphore(%arg6 : memref<!tpu.dma_semaphore, #tpu.memory_space<semaphore_mem>>) src(%6 : memref<4x2048xf32, #tpu.memory_space<any>>) dst(%arg5 : memref<4x2048xf32, #tpu.memory_space<vmem>>)
    %c0_3 = arith.constant 0 : index
    %c0_4 = arith.constant 0 : index
    %7 = vector.load %arg5[%c0_3, %c0_4] : memref<4x2048xf32, #tpu.memory_space<vmem>>, vector<4x2048xf32>
    %8 = arith.mulf %7, %7 : vector<4x2048xf32>
    %cst_5 = arith.constant dense<0.000000e+00> : vector<4xf32>
    %9 = vector.multi_reduction <add>, %8, %cst_5 [1] : vector<4x2048xf32> to vector<4xf32>
    %10 = vector.shape_cast %9 : vector<4xf32> to vector<4x1xf32>
    %cst_6 = arith.constant 1.000000e-30 : f32
    %11 = vector.broadcast %cst_6 : f32 to vector<4x1xf32>
    %12 = arith.maximumf %10, %11 : vector<4x1xf32>
    %13 = math.sqrt %5 : vector<4x1xf32>
    %14 = math.rsqrt %12 : vector<4x1xf32>
    %15 = arith.mulf %13, %14 : vector<4x1xf32>
    %cst_7 = arith.constant 0.316227764 : f32
    %16 = vector.broadcast %cst_7 : f32 to vector<4x1xf32>
    %17 = arith.mulf %15, %16 : vector<4x1xf32>
    %18 = vector.broadcast %17 : vector<4x1xf32> to vector<4x2048xf32>
    %19 = arith.mulf %18, %7 : vector<4x2048xf32>
    %20 = arith.addf %2, %19 : vector<4x2048xf32>
    %c0_8 = arith.constant 0 : index
    %c0_9 = arith.constant 0 : index
    %21 = vector.load %arg4[%c0_8, %c0_9] : memref<4x2048xf32, #tpu.memory_space<vmem>>, vector<4x2048xf32>
    tpu.vector_store %arg4[%c0_8, %c0_9], %20 {strides = array<i32>} : memref<4x2048xf32, #tpu.memory_space<vmem>>, vector<4x2048xf32>,
    return
  }
  func.func @transform_0(%arg0: i32, %arg1: memref<1xi32, #tpu.memory_space<smem>>) -> (i32, i32) {
    %c0_i32 = arith.constant 0 : i32
    %c0_i32_0 = arith.constant 0 : i32
    %c0_i32_1 = arith.constant 0 : i32
    return %c0_i32, %c0_i32_0 : i32, i32
  }
  func.func @transform_2(%arg0: i32, %arg1: memref<1xi32, #tpu.memory_space<smem>>) -> (i32, i32) {
    %c0_i32 = arith.constant 0 : i32
    %c0_i32_0 = arith.constant 0 : i32
    %c0_i32_1 = arith.constant 0 : i32
    return %c0_i32, %c0_i32_0 : i32, i32
  }
}

module attributes {stable_mosaic.version = 11 : i64} {
  func.func @_energy_scale_kernel(%arg0: i32, %arg1: memref<1xi32, #tpu.memory_space<smem>>, %arg2: memref<4x2048xf32, #tpu.memory_space<vmem>>, %arg3: memref<4x2048xf32, #tpu.memory_space<vmem>>, %arg4: memref<4x1xf32, #tpu.memory_space<vmem>>, %arg5: memref<4x1xf32, #tpu.memory_space<vmem>>, %arg6: memref<4x1xf32, #tpu.memory_space<vmem>>) attributes {dimension_semantics = [#tpu.dimension_semantics<arbitrary>], iteration_bounds = array<i64: 1>, scalar_prefetch = 1 : i64, scratch_operands = 2 : i64, tpu.core_type = #tpu.core_type<tc>, window_params = [{transform_indices = @transform_0, window_bounds = array<i64: 4, 2048>}, {transform_indices = @transform_1, window_bounds = array<i64: 4, 2048>}, {pipeline_mode = #tpu.pipeline_mode<synchronous>, transform_indices = @transform_2, window_bounds = array<i64: 4, 1>}]} {
    %c0_i32 = arith.constant 0 : i32
    %0 = arith.cmpi eq, %arg0, %c0_i32 : i32
    %1 = arith.extui %0 : i1 to i32
    %c0_i32_0 = arith.constant 0 : i32
    %2 = arith.cmpi ne, %1, %c0_i32_0 : i32
    scf.if %2 {
      %cst_15 = arith.constant 0.000000e+00 : f32
      %20 = vector.broadcast %cst_15 : f32 to vector<4x1xf32>
      %c0_16 = arith.constant 0 : index
      %c0_17 = arith.constant 0 : index
      %21 = vector.load %arg5[%c0_16, %c0_17] : memref<4x1xf32, #tpu.memory_space<vmem>>, vector<4x1xf32>
      tpu.vector_store %arg5[%c0_16, %c0_17], %20 {strides = array<i32>} : memref<4x1xf32, #tpu.memory_space<vmem>>, vector<4x1xf32>,
      %cst_18 = arith.constant 0.000000e+00 : f32
      %22 = vector.broadcast %cst_18 : f32 to vector<4x1xf32>
      %c0_19 = arith.constant 0 : index
      %c0_20 = arith.constant 0 : index
      %23 = vector.load %arg6[%c0_19, %c0_20] : memref<4x1xf32, #tpu.memory_space<vmem>>, vector<4x1xf32>
      tpu.vector_store %arg6[%c0_19, %c0_20], %22 {strides = array<i32>} : memref<4x1xf32, #tpu.memory_space<vmem>>, vector<4x1xf32>,
    } else {
    }
    %c0 = arith.constant 0 : index
    %c0_1 = arith.constant 0 : index
    %3 = vector.load %arg2[%c0, %c0_1] : memref<4x2048xf32, #tpu.memory_space<vmem>>, vector<4x2048xf32>
    %c0_2 = arith.constant 0 : index
    %c0_3 = arith.constant 0 : index
    %4 = vector.load %arg3[%c0_2, %c0_3] : memref<4x2048xf32, #tpu.memory_space<vmem>>, vector<4x2048xf32>
    %c0_4 = arith.constant 0 : index
    %c0_5 = arith.constant 0 : index
    %5 = vector.load %arg5[%c0_4, %c0_5] : memref<4x1xf32, #tpu.memory_space<vmem>>, vector<4x1xf32>
    %6 = arith.mulf %3, %3 : vector<4x2048xf32>
    %cst = arith.constant dense<0.000000e+00> : vector<4xf32>
    %7 = vector.multi_reduction <add>, %6, %cst [1] : vector<4x2048xf32> to vector<4xf32>
    %8 = vector.shape_cast %7 : vector<4xf32> to vector<4x1xf32>
    %9 = arith.addf %5, %8 : vector<4x1xf32>
    %c0_6 = arith.constant 0 : index
    %c0_7 = arith.constant 0 : index
    %10 = vector.load %arg5[%c0_6, %c0_7] : memref<4x1xf32, #tpu.memory_space<vmem>>, vector<4x1xf32>
    tpu.vector_store %arg5[%c0_6, %c0_7], %9 {strides = array<i32>} : memref<4x1xf32, #tpu.memory_space<vmem>>, vector<4x1xf32>,
    %c0_8 = arith.constant 0 : index
    %c0_9 = arith.constant 0 : index
    %11 = vector.load %arg6[%c0_8, %c0_9] : memref<4x1xf32, #tpu.memory_space<vmem>>, vector<4x1xf32>
    %12 = arith.mulf %4, %4 : vector<4x2048xf32>
    %cst_10 = arith.constant dense<0.000000e+00> : vector<4xf32>
    %13 = vector.multi_reduction <add>, %12, %cst_10 [1] : vector<4x2048xf32> to vector<4xf32>
    %14 = vector.shape_cast %13 : vector<4xf32> to vector<4x1xf32>
    %15 = arith.addf %11, %14 : vector<4x1xf32>
    %c0_11 = arith.constant 0 : index
    %c0_12 = arith.constant 0 : index
    %16 = vector.load %arg6[%c0_11, %c0_12] : memref<4x1xf32, #tpu.memory_space<vmem>>, vector<4x1xf32>
    tpu.vector_store %arg6[%c0_11, %c0_12], %15 {strides = array<i32>} : memref<4x1xf32, #tpu.memory_space<vmem>>, vector<4x1xf32>,
    %c0_i32_13 = arith.constant 0 : i32
    %17 = arith.cmpi eq, %arg0, %c0_i32_13 : i32
    %18 = arith.extui %17 : i1 to i32
    %c0_i32_14 = arith.constant 0 : i32
    %19 = arith.cmpi ne, %18, %c0_i32_14 : i32
    scf.if %19 {
      %c0_15 = arith.constant 0 : index
      %c0_16 = arith.constant 0 : index
      %20 = vector.load %arg5[%c0_15, %c0_16] : memref<4x1xf32, #tpu.memory_space<vmem>>, vector<4x1xf32>
      %c0_17 = arith.constant 0 : index
      %c0_18 = arith.constant 0 : index
      %21 = vector.load %arg6[%c0_17, %c0_18] : memref<4x1xf32, #tpu.memory_space<vmem>>, vector<4x1xf32>
      %cst_19 = arith.constant 1.000000e-30 : f32
      %22 = vector.broadcast %cst_19 : f32 to vector<4x1xf32>
      %23 = arith.maximumf %21, %22 : vector<4x1xf32>
      %24 = math.sqrt %20 : vector<4x1xf32>
      %25 = math.rsqrt %23 : vector<4x1xf32>
      %26 = arith.mulf %24, %25 : vector<4x1xf32>
      %cst_20 = arith.constant 0.316227764 : f32
      %27 = vector.broadcast %cst_20 : f32 to vector<4x1xf32>
      %28 = arith.mulf %26, %27 : vector<4x1xf32>
      %c0_21 = arith.constant 0 : index
      %c0_22 = arith.constant 0 : index
      %29 = vector.load %arg4[%c0_21, %c0_22] : memref<4x1xf32, #tpu.memory_space<vmem>>, vector<4x1xf32>
      tpu.vector_store %arg4[%c0_21, %c0_22], %28 {strides = array<i32>} : memref<4x1xf32, #tpu.memory_space<vmem>>, vector<4x1xf32>,
    } else {
    }
    return
  }
  func.func @transform_0(%arg0: i32, %arg1: memref<1xi32, #tpu.memory_space<smem>>) -> (i32, i32) {
    %c0_i32 = arith.constant 0 : i32
    %c0_i32_0 = arith.constant 0 : i32
    return %c0_i32, %arg0 : i32, i32
  }
  func.func @transform_1(%arg0: i32, %arg1: memref<1xi32, #tpu.memory_space<smem>>) -> (i32, i32) {
    %c0 = arith.constant 0 : index
    %0 = memref.load %arg1[%c0] : memref<1xi32, #tpu.memory_space<smem>>
    %1 = arith.addi %0, %arg0 : i32
    %c0_i32 = arith.constant 0 : i32
    %c0_i32_0 = arith.constant 0 : i32
    return %c0_i32, %1 : i32, i32
  }
  func.func @transform_2(%arg0: i32, %arg1: memref<1xi32, #tpu.memory_space<smem>>) -> (i32, i32) {
    %c0_i32 = arith.constant 0 : i32
    %c0_i32_0 = arith.constant 0 : i32
    %c0_i32_1 = arith.constant 0 : i32
    return %c0_i32, %c0_i32_0 : i32, i32
  }
}

</mosaic_0001>

<llo_original>
// kernel: tpu_custom_call.1
$region0: #{tpu_custom_call.1}
  #allocation0 [shape = 'u32[]', space=smem, size = 0x4, offset = 0x4, fixed_abs, tag = 'smem constant byte address 0x4 - core index']
  #allocation1 [shape = 'u32[144,128]{1,0:T(1,128)}', space=vmem, size = 0x12000, scoped, tag = 'internal scratch']
  #allocation2 [shape = 'f32[4,1]{1,0:T(4,128)}', space=vmem, size = 0x800, scoped, tag = 'scratch operand']
  #allocation3 [shape = 'f32[4,1]{1,0:T(4,128)}', space=vmem, size = 0x800, scoped, tag = 'scratch operand']
  #allocation4 [shape = 's32[1]{0}', space=sflag, size = 0x4, scoped, tag = 'scoped memory for tpu_custom_call.1']
  #allocation5 [shape = 's32[1]{0:T(128)S(6)}', space=smem, size = 0x200, scoped, tag = 'prefetched SMEM operand 0']
  %s0 = inlined_call_operand.<no memory space> [shape: s32[1], index: 0, kind: input, shape index: {}]
  %s1 = inlined_call_operand.hbm [shape: f32[4,2048], index: 1, kind: input, shape index: {}]
  %s2 = inlined_call_operand.hbm [shape: f32[4,4096], index: 2, kind: input, shape index: {}]
  %s3 = inlined_call_operand.vmem [shape: f32[4,1], index: 3, kind: output, shape index: {}]
  %s4 = sld [smem:[#allocation0]]
  $region34: #{tpu_custom_call.1} parent=0
    _
  %s6 = ssub.s32 1, %s4
  %s7 = scalar_select 0, %s6, %s4
  %8 = sst [smem:[#allocation5]] %s0
  $region1: #{tpu_custom_call.1} parent=0
    #allocation6 [shape = 'u8[32768]{0}', space=vmem, size = 0x8000, scoped, tag = 'input window, operand 1, single buffered']
    #allocation7 [shape = 's32[1]{0}', space=sflag, size = 0x4, scoped, tag = 'scoped memory for tpu_custom_call.1']
    #allocation8 [shape = 'u8[32768]{0}', space=vmem, size = 0x8000, scoped, tag = 'input window, operand 2, single buffered']
    #allocation9 [shape = 's32[1]{0}', space=sflag, size = 0x4, scoped, tag = 'scoped memory for tpu_custom_call.1']
    %9 = vsyncpa [#allocation7], 0
    %10 = vsyncpa [#allocation9], 0
    // Predicated region
    $region2: #{tpu_custom_call.1} parent=1 // pred_check
      _
    $region3: #{tpu_custom_call.1} parent=1 // pred_check_branch
      %12 = sbr.rel (0) target = $region5
    $region4: #{tpu_custom_call.1} parent=1 // pred_region
      %s14 = ssub.s32 1024, 1024
      %15 = vsyncadd [#allocation7], %s14
      %s17 = sshll.u32 [#allocation6], 4
      %s18 = int_to_ptr.vmem [resolvable:$true] %s17
      %20 = dma.hbm_to_vmem [thread:$0]  %s1, 1024, %s18, [#allocation7]
    $region5: #{tpu_custom_call.1} parent=1 // pred_fallthru
      _
    // Predicated region
    $region6: #{tpu_custom_call.1} parent=1 // pred_check
      _
    $region7: #{tpu_custom_call.1} parent=1 // pred_check_branch
      %22 = sbr.rel (0) target = $region9
    $region8: #{tpu_custom_call.1} parent=1 // pred_region
      %s23 = sld [smem:[#allocation5]]
      %s24 = sadd.s32 %s23, 0
      %s25 = smul.u32 16, %s24
      %s27 = ssub.s32 1024, 1024
      %28 = vsyncadd [#allocation9], %s27
      %s29 = smul.addr %s25, 64
      %s30 = scalar_lea.hbm %s2, %s29
      %s32 = sshll.u32 [#allocation8], 4
      %s33 = int_to_ptr.vmem [resolvable:$true] %s32
      %35 = dma.hbm_to_vmem [thread:$0]  %s30, 1024, %s33, [#allocation9]
    $region9: #{tpu_custom_call.1} parent=1 // pred_fallthru
      _
    // Predicated region
    $region10: #{tpu_custom_call.1} parent=1 // pred_check
      _
    $region11: #{tpu_custom_call.1} parent=1 // pred_check_branch
      %37 = sbr.rel (0) target = $region13
    $region12: #{tpu_custom_call.1} parent=1 // pred_region
      %38 = dma.done [#allocation7], 1024
    $region13: #{tpu_custom_call.1} parent=1 // pred_fallthru
      _
    // Predicated region
    $region14: #{tpu_custom_call.1} parent=1 // pred_check
      _
    $region15: #{tpu_custom_call.1} parent=1 // pred_check_branch
      %40 = sbr.rel (0) target = $region17
    $region16: #{tpu_custom_call.1} parent=1 // pred_region
      %41 = dma.done [#allocation9], 1024
    $region17: #{tpu_custom_call.1} parent=1 // pred_fallthru
      _
    %s42 = sld [smem:[#allocation5]]
    %s43 = sadd.s32 %s42, 0
    %s44 = smul.u32 16, %s43
    %p45 = scmp.eq.s32.totalorder 0, 0
    // Predicated region
    $region18: #{tpu_custom_call.1} parent=1 // pred_check
      %p46 = pneg %p45
    $region19: #{tpu_custom_call.1} parent=1 // pred_check_branch
      %48 = sbr.rel (%p46) target = $region21
    $region20: #{tpu_custom_call.1} parent=1 // pred_region
      %vm49 = vcmask 3072
      %50 = vst.msk [vmem:[#allocation2] sm:$0xf] %vm49, 0.0
      %51 = vst.msk [vmem:[#allocation3] sm:$0xf] %vm49, 0.0
    $region21: #{tpu_custom_call.1} parent=1 // pred_fallthru
      _
    %v52 = vld [vmem:[#allocation6] sm:$0xff]
    %v53 = vld [vmem:[#allocation6 + $0x8] sm:$0xff]
    %v54 = vld [vmem:[#allocation6 + $0x10] sm:$0xff]
    %v55 = vld [vmem:[#allocation6 + $0x18] sm:$0xff]
    %v56 = vld [vmem:[#allocation6 + $0x20] sm:$0xff]
    %v57 = vld [vmem:[#allocation6 + $0x28] sm:$0xff]
    %v58 = vld [vmem:[#allocation6 + $0x30] sm:$0xff]
    %v59 = vld [vmem:[#allocation6 + $0x38] sm:$0xff]
    %v60 = vld [vmem:[#allocation8] sm:$0xff]
    %v61 = vld [vmem:[#allocation8 + $0x8] sm:$0xff]
    %v62 = vld [vmem:[#allocation8 + $0x10] sm:$0xff]
    %v63 = vld [vmem:[#allocation8 + $0x18] sm:$0xff]
    %v64 = vld [vmem:[#allocation8 + $0x20] sm:$0xff]
    %v65 = vld [vmem:[#allocation8 + $0x28] sm:$0xff]
    %v66 = vld [vmem:[#allocation8 + $0x30] sm:$0xff]
    %v67 = vld [vmem:[#allocation8 + $0x38] sm:$0xff]
    %v68 = vld [vmem:[#allocation2] sm:$0xf]
    %v69 = vmul.f32 %v52, %v52
    %v70 = vmul.f32 %v53, %v53
    %v71 = vmul.f32 %v54, %v54
    %v72 = vmul.f32 %v55, %v55
    %v73 = vmul.f32 %v56, %v56
    %v74 = vmul.f32 %v57, %v57
    %v75 = vmul.f32 %v58, %v58
    %v76 = vmul.f32 %v59, %v59
    %v85 = vcombine.high %v69, %v69
    %v86 = vcombine.high %v70, %v70
    %v87 = vcombine.high %v71, %v71
    %v88 = vcombine.high %v72, %v72
    %v89 = vcombine.high %v73, %v73
    %v90 = vcombine.high %v74, %v74
    %v91 = vcombine.high %v75, %v75
    %v92 = vcombine.high %v76, %v76
    %vm101 = vcmask 1043456
    %v102 = vsel %vm101, %v69, 0.0
    %v103 = vsel %vm101, %v85, 0.0
    %v104 = vadd.f32 %v102, %v103
    %v105 = vsel %vm101, %v70, 0.0
    %v106 = vadd.f32 %v104, %v105
    %v107 = vsel %vm101, %v86, 0.0
    %v108 = vadd.f32 %v106, %v107
    %v109 = vsel %vm101, %v71, 0.0
    %v110 = vadd.f32 %v108, %v109
    %v111 = vsel %vm101, %v87, 0.0
    %v112 = vadd.f32 %v110, %v111
    %v113 = vsel %vm101, %v72, 0.0
    %v114 = vadd.f32 %v112, %v113
    %v115 = vsel %vm101, %v88, 0.0
    %v116 = vadd.f32 %v114, %v115
    %v117 = vsel %vm101, %v73, 0.0
    %v118 = vadd.f32 %v116, %v117
    %v119 = vsel %vm101, %v89, 0.0
    %v120 = vadd.f32 %v118, %v119
    %v121 = vsel %vm101, %v74, 0.0
    %v122 = vadd.f32 %v120, %v121
    %v123 = vsel %vm101, %v90, 0.0
    %v124 = vadd.f32 %v122, %v123
    %v125 = vsel %vm101, %v75, 0.0
    %v126 = vadd.f32 %v124, %v125
    %v127 = vsel %vm101, %v91, 0.0
    %v128 = vadd.f32 %v126, %v127
    %v129 = vsel %vm101, %v76, 0.0
    %v130 = vadd.f32 %v128, %v129
    %v131 = vsel %vm101, %v92, 0.0
    %v132 = vadd.f32 %v130, %v131
    %133 = vadd.xlane.f32.xlu0 %v132
    %v134 = vpop.xlane.xlu0 %133
    %v135 = vadd.f32 %v68, %v134
    %vm136 = vcmask 3072
    %137 = vst.msk [vmem:[#allocation2] sm:$0xf] %vm136, %v135
    %v138 = vld [vmem:[#allocation3] sm:$0xf]
    %v139 = vmul.f32 %v60, %v60
    %v140 = vmul.f32 %v61, %v61
    %v141 = vmul.f32 %v62, %v62
    %v142 = vmul.f32 %v63, %v63
    %v143 = vmul.f32 %v64, %v64
    %v144 = vmul.f32 %v65, %v65
    %v145 = vmul.f32 %v66, %v66
    %v146 = vmul.f32 %v67, %v67
    %v155 = vcombine.high %v139, %v139
    %v156 = vcombine.high %v140, %v140
    %v157 = vcombine.high %v141, %v141
    %v158 = vcombine.high %v142, %v142
    %v159 = vcombine.high %v143, %v143
    %v160 = vcombine.high %v144, %v144
    %v161 = vcombine.high %v145, %v145
    %v162 = vcombine.high %v146, %v146
    %v171 = vsel %vm101, %v139, 0.0
    %v172 = vsel %vm101, %v155, 0.0
    %v173 = vadd.f32 %v171, %v172
    %v174 = vsel %vm101, %v140, 0.0
    %v175 = vadd.f32 %v173, %v174
    %v176 = vsel %vm101, %v156, 0.0
    %v177 = vadd.f32 %v175, %v176
    %v178 = vsel %vm101, %v141, 0.0
    %v179 = vadd.f32 %v177, %v178
    %v180 = vsel %vm101, %v157, 0.0
    %v181 = vadd.f32 %v179, %v180
    %v182 = vsel %vm101, %v142, 0.0
    %v183 = vadd.f32 %v181, %v182
    %v184 = vsel %vm101, %v158, 0.0
    %v185 = vadd.f32 %v183, %v184
    %v186 = vsel %vm101, %v143, 0.0
    %v187 = vadd.f32 %v185, %v186
    %v188 = vsel %vm101, %v159, 0.0
    %v189 = vadd.f32 %v187, %v188
    %v190 = vsel %vm101, %v144, 0.0
    %v191 = vadd.f32 %v189, %v190
    %v192 = vsel %vm101, %v160, 0.0
    %v193 = vadd.f32 %v191, %v192
    %v194 = vsel %vm101, %v145, 0.0
    %v195 = vadd.f32 %v193, %v194
    %v196 = vsel %vm101, %v161, 0.0
    %v197 = vadd.f32 %v195, %v196
    %v198 = vsel %vm101, %v146, 0.0
    %v199 = vadd.f32 %v197, %v198
    %v200 = vsel %vm101, %v162, 0.0
    %v201 = vadd.f32 %v199, %v200
    %202 = vadd.xlane.f32.xlu0 %v201
    %v203 = vpop.xlane.xlu0 %202
    %v204 = vadd.f32 %v138, %v203
    %205 = vst.msk [vmem:[#allocation3] sm:$0xf] %vm136, %v204
    // Predicated region
    $region22: #{tpu_custom_call.1} parent=1 // pred_check
      %p206 = pneg %p45
    $region23: #{tpu_custom_call.1} parent=1 // pred_check_branch
      %208 = sbr.rel (%p206) target = $region25
    $region24: #{tpu_custom_call.1} parent=1 // pred_region
      %v209 = vld [vmem:[#allocation2] sm:$0xf]
      %v210 = vld [vmem:[#allocation3] sm:$0xf]
      %v211 = vmax.f32 %v210, 1e-30
      %v212 = vrsqrt.pop %v209
      %v213 = vmul.f32 %v209, %v212
      %vm214 = vcmp.eq.f32.partialorder %v209, inf
      %v215 = vsel %vm214, %v209, %v213
      %vm216 = vcmp.eq.f32.partialorder %v209, 0.0
      %v217 = vand.u32 %v209, 2147483648
      %v218 = vsel %vm216, %v217, %v215
      %v219 = vrsqrt.pop %v211
      %v220 = vmul.f32 %v218, %v219
      %v221 = vmul.f32 %v220, 0.31622776
      %222 = vst.msk [vmem:[%s3] sm:$0xf] %vm136, %v221
    $region25: #{tpu_custom_call.1} parent=1 // pred_fallthru
      _
    // Predicated region
    $region26: #{tpu_custom_call.1} parent=1 // pred_check
      _
    $region27: #{tpu_custom_call.1} parent=1 // pred_check_branch
      %224 = sbr.rel (0) target = $region29
    $region28: #{tpu_custom_call.1} parent=1 // pred_region
      _
    $region29: #{tpu_custom_call.1} parent=1 // pred_fallthru
      _
    // Predicated region
    $region30: #{tpu_custom_call.1} parent=1 // pred_check
      _
    $region31: #{tpu_custom_call.1} parent=1 // pred_check_branch
      %226 = sbr.rel (0) target = $region33
    $region32: #{tpu_custom_call.1} parent=1 // pred_region
      _
    $region33: #{tpu_custom_call.1} parent=1 // pred_fallthru
      _
    %227 = vsyncpa [#allocation7], 1
    %228 = vsyncpa [#allocation9], 1

</llo_original>
